<compile_context>
chip_gen: v5e
topology: v5e:2x2
jax: 0.10.0
libtpu: 0.0.40
codegen_flags: <defaults>
</compile_context>

<pallas_src>
import functools

import jax
import jax.numpy as jnp
import numpy as np
from jax import lax
from jax.experimental import pallas as pl
from jax.experimental.pallas import tpu as pltpu


def _cae_loss_kernel(x_ref, w1t_ref, b1_ref, w2t_ref, b2_ref, w1sqw_ref,
                     out_ref, acc_rec_ref, acc_con_ref, *,
                     true_n, true_d, lat, pack, tile_rows, need_mask):
    # x_ref     : VMEM [T, P*D]    packed batch tile (P samples per row)
    # w1t_ref   : VMEM [P*D, P*L]  block-diagonal encoder weight (transposed)
    # b1_ref    : VMEM [1, P*L]    encoder bias, tiled P times
    # w2t_ref   : VMEM [P*L, P*D]  block-diagonal decoder weight (transposed)
    # b2_ref    : VMEM [1, P*D]    decoder bias, tiled P times
    # w1sqw_ref : VMEM [1, P*L]    contractive_weight * ||W1[j,:]||^2, tiled
    # out_ref   : SMEM (1, 1) f32  total loss
    # acc_*_ref : VMEM (8, width)  f32 vector accumulators (persist across steps)
    i = pl.program_id(0)
    nsteps = pl.num_programs(0)
    width_x = pack * true_d          # packed feature width (usually 128)
    width_h = pack * lat             # packed latent width

    @pl.when(i == 0)
    def _init():
        acc_rec_ref[...] = jnp.zeros_like(acc_rec_ref)
        acc_con_ref[...] = jnp.zeros_like(acc_con_ref)

    x = x_ref[...].astype(jnp.float32)              # [T, P*D]
    w1t = w1t_ref[...].astype(jnp.float32)          # [P*D, P*L]
    b1 = b1_ref[...].astype(jnp.float32)            # [1, P*L]
    w2t = w2t_ref[...].astype(jnp.float32)          # [P*L, P*D]
    b2 = b2_ref[...].astype(jnp.float32)            # [1, P*D]
    w1sqw = w1sqw_ref[...].astype(jnp.float32)      # [1, P*L]

    # Encoder / decoder forward (MXU, f32 accumulation).
    h = jnp.tanh(jnp.dot(x, w1t, preferred_element_type=jnp.float32) + b1)   # [T, P*L]
    x_hat = jnp.dot(h, w2t, preferred_element_type=jnp.float32) + b2         # [T, P*D]

    diff = x_hat - x
    sq_err = diff * diff                                                     # [T, P*D]

    # Contractive penalty terms (weight * ||W1 row||^2 pre-folded): VPU only.
    act = 1.0 - h * h
    contract = (act * act) * w1sqw                                           # [T, P*L]

    def _accum(se, ct):
        # Row-group reduction: pure VPU adds into the resident accumulators.
        acc_rec_ref[...] += se.reshape(tile_rows // 8, 8, width_x).sum(axis=0)
        acc_con_ref[...] += ct.reshape(tile_rows // 8, 8, width_h).sum(axis=0)

    if need_mask:
        def _sample_ids(width, per_lane):
            row = lax.broadcasted_iota(jnp.int32, (tile_rows, width), 0)
            sid = (i * tile_rows + row) * pack
            if pack > 1:
                lane = lax.broadcasted_iota(jnp.int32, (tile_rows, width), 1)
                if per_lane & (per_lane - 1) == 0:       # power of two -> shift
                    sid = sid + (lane >> (per_lane.bit_length() - 1))
                else:
                    sid = sid + lane // per_lane
            return sid

        @pl.when(i < nsteps - 1)
        def _steady():
            _accum(sq_err, contract)

        @pl.when(i == nsteps - 1)
        def _masked_last():
            se = jnp.where(_sample_ids(width_x, true_d) < true_n, sq_err, 0.0)
            ct = jnp.where(_sample_ids(width_h, lat) < true_n, contract, 0.0)
            _accum(se, ct)
    else:
        _accum(sq_err, contract)

    @pl.when(i == nsteps - 1)
    def _finalize():
        recon = jnp.sum(acc_rec_ref[...]) * (1.0 / (true_n * true_d))
        penalty = jnp.sum(acc_con_ref[...]) * (1.0 / true_n)   # weight pre-folded
        out_ref[0, 0] = recon + penalty


def cae_loss(x, w1, b1, w2, b2, contractive_weight, *, target_tile_bytes=2 << 20):
    """Total CAE loss = MSE(x_hat, x) + weight * mean_i ||J_enc(x_i)||_F^2."""
    n, d = x.shape
    l = w1.shape[0]
    f32 = jnp.float32

    # Lane-dense pack factor: fold `pack` samples into one 128-lane row.
    pack = (128 // d) if (d <= 128 and 128 % d == 0) else 1
    width_x = pack * d
    width_h = pack * l

    # ---- weight plumbing (done once in XLA) ----
    w1f = w1.astype(f32)
    w1t = w1f.T                                            # [D, L]
    w2t = w2.astype(f32).T                                 # [L, D]
    w1sq = jnp.sum(w1f * w1f, axis=1) * f32(contractive_weight)   # [L]
    if pack > 1:
        eye = jnp.eye(pack, dtype=f32)
        w1t_blk = jnp.kron(eye, w1t)                       # [P*D, P*L] block-diag
        w2t_blk = jnp.kron(eye, w2t)                       # [P*L, P*D] block-diag
        b1_row = jnp.tile(b1.astype(f32), pack).reshape(1, width_h)
        b2_row = jnp.tile(b2.astype(f32), pack).reshape(1, width_x)
        w1sq_row = jnp.tile(w1sq, pack).reshape(1, width_h)
    else:
        w1t_blk, w2t_blk = w1t, w2t
        b1_row = b1.astype(f32).reshape(1, width_h)
        b2_row = b2.astype(f32).reshape(1, width_x)
        w1sq_row = w1sq.reshape(1, width_h)

    # ---- pack x: [N, D] -> [rows, P*D]; pad samples so rows >= 8 ----
    rows = max(-(-n // pack), 8)
    n_pad = rows * pack
    xp = x if n_pad == n else jnp.pad(x, ((0, n_pad - n), (0, 0)))
    x_packed = xp.reshape(rows, width_x)

    # ---- byte-budgeted batch tile (multiple of 8 packed rows) ----
    itemsize = jnp.dtype(x.dtype).itemsize
    budget_rows = max(8, (int(target_tile_bytes) // (width_x * itemsize)) // 8 * 8)
    tile_rows = int(min(budget_rows, (rows // 8) * 8))
    grid_n = pl.cdiv(rows, tile_rows)
    need_mask = (grid_n * tile_rows * pack) != n    # sample pad and/or partial block

    kernel = functools.partial(
        _cae_loss_kernel, true_n=n, true_d=d, lat=l, pack=pack,
        tile_rows=tile_rows, need_mask=need_mask)

    cost = pl.CostEstimate(
        flops=int(4 * n * d * l + 8 * n * (d + l)),
        transcendentals=int(n * l),
        bytes_accessed=int(n * d * itemsize + (2 * width_x * width_h
                                               + 2 * width_h + 2 * width_x) * 4 + 4))

    out = pl.pallas_call(
        kernel,
        out_shape=jax.ShapeDtypeStruct((1, 1), jnp.float32),
        grid_spec=pltpu.PrefetchScalarGridSpec(
            num_scalar_prefetch=0,
            grid=(grid_n,),
            in_specs=[
                pl.BlockSpec((tile_rows, width_x), lambda i: (i, 0)),   # x (pipelined)
                pl.BlockSpec((width_x, width_h), lambda i: (0, 0)),     # W1t (resident)
                pl.BlockSpec((1, width_h), lambda i: (0, 0)),           # b1
                pl.BlockSpec((width_h, width_x), lambda i: (0, 0)),     # W2t (resident)
                pl.BlockSpec((1, width_x), lambda i: (0, 0)),           # b2
                pl.BlockSpec((1, width_h), lambda i: (0, 0)),           # weight*||W1||^2
            ],
            out_specs=pl.BlockSpec(memory_space=pltpu.MemorySpace.SMEM),
            scratch_shapes=[
                pltpu.VMEM((8, width_x), jnp.float32),    # recon accumulator
                pltpu.VMEM((8, width_h), jnp.float32),    # contract accumulator
            ],
        ),
        compiler_params=pltpu.CompilerParams(
            dimension_semantics=("arbitrary",),           # sequential batch reduction
            vmem_limit_bytes=32 * 1024 * 1024,            # ~4-5 MiB used; safe on v7x
        ),
        cost_estimate=cost,
    )(x_packed, w1t_blk, b1_row, w2t_blk, b2_row, w1sq_row)
    return out[0, 0]


def cae_loss_ref(x, w1, b1, w2, b2, contractive_weight):
    """Pure-JAX reference mirroring the PyTorch CAELoss.forward semantics."""
    h = jnp.tanh(x @ w1.T + b1)                          # [N, L]
    x_hat = h @ w2.T + b2                                # [N, D]
    recon = jnp.mean((x_hat - x) ** 2)
    dpi = (1.0 - h ** 2)[:, :, None] * w1[None, :, :]    # [N, L, D] Jacobian
    fro = jnp.sqrt(jnp.sum(dpi ** 2, axis=(1, 2)))       # matrix_norm(..., 'fro')
    contract = jnp.mean(fro ** 2)
    return recon + contractive_weight * contract


if __name__ == "__main__":
    key = jax.random.PRNGKey(0)
    D, L = 16, 8
    cw = 0.1
    k_w1, k_b1, k_w2, k_b2, k1, k2, k3, k4 = jax.random.split(key, 8)

    w1 = jax.random.normal(k_w1, (L, D), dtype=jnp.float32) * 0.2   # encoder weight
    b1 = jax.random.normal(k_b1, (L,), dtype=jnp.float32) * 0.1     # encoder bias
    w2 = jax.random.normal(k_w2, (D, L), dtype=jnp.float32) * 0.2   # decoder weight
    b2 = jax.random.normal(k_b2, (D,), dtype=jnp.float32) * 0.1     # decoder bias

    def _check(loss, ref):
        jax.block_until_ready(loss)
        np.testing.assert_allclose(np.asarray(loss), np.asarray(ref),
                                   rtol=2e-4, atol=1e-5)

    # Case 1: tiny batch -> sample padding + masked single grid step.
    x1 = jax.random.normal(k1, (8, D), dtype=jnp.float32)
    _check(cae_loss(x1, w1, b1, w2, b2, cw), cae_loss_ref(x1, w1, b1, w2, b2, cw))

    # Case 2: exactly pack/tile-aligned batch -> unmasked path.
    x2 = jax.random.normal(k2, (64, D), dtype=jnp.float32)
    _check(cae_loss(x2, w1, b1, w2, b2, cw), cae_loss_ref(x2, w1, b1, w2, b2, cw))

    # Case 3: many grid steps (small forced tile) with ragged last tile.
    x3 = jax.random.normal(k3, (1000, D), dtype=jnp.float32)
    _check(cae_loss(x3, w1, b1, w2, b2, cw, target_tile_bytes=4096),
           cae_loss_ref(x3, w1, b1, w2, b2, cw))

    # Case 4: fallback path (D does not divide 128 -> no lane packing), ragged N.
    D4, L4 = 40, 12
    kk = jax.random.split(k4, 5)
    w1_4 = jax.random.normal(kk[0], (L4, D4), dtype=jnp.float32) * 0.2
    b1_4 = jax.random.normal(kk[1], (L4,), dtype=jnp.float32) * 0.1
    w2_4 = jax.random.normal(kk[2], (D4, L4), dtype=jnp.float32) * 0.2
    b2_4 = jax.random.normal(kk[3], (D4,), dtype=jnp.float32) * 0.1
    x4 = jax.random.normal(kk[4], (37, D4), dtype=jnp.float32)
    _check(cae_loss(x4, w1_4, b1_4, w2_4, b2_4, cw),
           cae_loss_ref(x4, w1_4, b1_4, w2_4, b2_4, cw))

    print("KERNEL_OK")
</pallas_src>

<mosaic_0001>
module attributes {stable_mosaic.version = 11 : i64} {
  func.func @_cae_loss_kernel(%arg0: i32, %arg1: memref<8x128xf32, #tpu.memory_space<vmem>>, %arg2: memref<128x64xf32, #tpu.memory_space<vmem>>, %arg3: memref<1x64xf32, #tpu.memory_space<vmem>>, %arg4: memref<64x128xf32, #tpu.memory_space<vmem>>, %arg5: memref<1x128xf32, #tpu.memory_space<vmem>>, %arg6: memref<1x64xf32, #tpu.memory_space<vmem>>, %arg7: memref<1x1xf32, #tpu.memory_space<smem>>, %arg8: memref<8x128xf32, #tpu.memory_space<vmem>>, %arg9: memref<8x64xf32, #tpu.memory_space<vmem>>) attributes {dimension_semantics = [#tpu.dimension_semantics<arbitrary>], iteration_bounds = array<i64: 1>, scalar_prefetch = 0 : i64, scratch_operands = 2 : i64, tpu.core_type = #tpu.core_type<tc>, window_params = [{transform_indices = @transform_0, window_bounds = array<i64: 8, 128>}, {pipeline_mode = #tpu.pipeline_mode<synchronous>, transform_indices = @transform_1, window_bounds = array<i64: 128, 64>}, {pipeline_mode = #tpu.pipeline_mode<synchronous>, transform_indices = @transform_2, window_bounds = array<i64: 1, 64>}, {pipeline_mode = #tpu.pipeline_mode<synchronous>, transform_indices = @transform_3, window_bounds = array<i64: 64, 128>}, {pipeline_mode = #tpu.pipeline_mode<synchronous>, transform_indices = @transform_4, window_bounds = array<i64: 1, 128>}, {pipeline_mode = #tpu.pipeline_mode<synchronous>, transform_indices = @transform_5, window_bounds = array<i64: 1, 64>}, {transform_indices = @transform_6, window_bounds = array<i64: 1, 1>}]} {
    %c0_i32 = arith.constant 0 : i32
    %0 = arith.cmpi eq, %arg0, %c0_i32 : i32
    %1 = arith.extui %0 : i1 to i32
    %c0_i32_0 = arith.constant 0 : i32
    %2 = arith.cmpi ne, %1, %c0_i32_0 : i32
    scf.if %2 {
      %cst_20 = arith.constant 0.000000e+00 : f32
      %33 = vector.broadcast %cst_20 : f32 to vector<8x128xf32>
      %c0_21 = arith.constant 0 : index
      %c0_22 = arith.constant 0 : index
      %34 = vector.load %arg8[%c0_21, %c0_22] : memref<8x128xf32, #tpu.memory_space<vmem>>, vector<8x128xf32>
      tpu.vector_store %arg8[%c0_21, %c0_22], %33 {strides = array<i32>} : memref<8x128xf32, #tpu.memory_space<vmem>>, vector<8x128xf32>,
      %cst_23 = arith.constant 0.000000e+00 : f32
      %35 = vector.broadcast %cst_23 : f32 to vector<8x64xf32>
      %c0_24 = arith.constant 0 : index
      %c0_25 = arith.constant 0 : index
      %36 = vector.load %arg9[%c0_24, %c0_25] : memref<8x64xf32, #tpu.memory_space<vmem>>, vector<8x64xf32>
      tpu.vector_store %arg9[%c0_24, %c0_25], %35 {strides = array<i32>} : memref<8x64xf32, #tpu.memory_space<vmem>>, vector<8x64xf32>,
    } else {
    }
    %c0 = arith.constant 0 : index
    %c0_1 = arith.constant 0 : index
    %3 = vector.load %arg1[%c0, %c0_1] : memref<8x128xf32, #tpu.memory_space<vmem>>, vector<8x128xf32>
    %c0_2 = arith.constant 0 : index
    %c0_3 = arith.constant 0 : index
    %4 = vector.load %arg2[%c0_2, %c0_3] : memref<128x64xf32, #tpu.memory_space<vmem>>, vector<128x64xf32>
    %c0_4 = arith.constant 0 : index
    %c0_5 = arith.constant 0 : index
    %5 = vector.load %arg3[%c0_4, %c0_5] : memref<1x64xf32, #tpu.memory_space<vmem>>, vector<1x64xf32>
    %c0_6 = arith.constant 0 : index
    %c0_7 = arith.constant 0 : index
    %6 = vector.load %arg4[%c0_6, %c0_7] : memref<64x128xf32, #tpu.memory_space<vmem>>, vector<64x128xf32>
    %c0_8 = arith.constant 0 : index
    %c0_9 = arith.constant 0 : index
    %7 = vector.load %arg5[%c0_8, %c0_9] : memref<1x128xf32, #tpu.memory_space<vmem>>, vector<1x128xf32>
    %c0_10 = arith.constant 0 : index
    %c0_11 = arith.constant 0 : index
    %8 = vector.load %arg6[%c0_10, %c0_11] : memref<1x64xf32, #tpu.memory_space<vmem>>, vector<1x64xf32>
    %cst = arith.constant dense<0.000000e+00> : vector<8x64xf32>
    %9 = tpu.matmul %3, %4, %cst {dimension_numbers = #tpu.dot_dimension_numbers<[1], [0], [0], [1], [0, 0, 1, 1], [], []>} : vector<8x128xf32>, vector<128x64xf32>, vector<8x64xf32> -> vector<8x64xf32>
    %10 = vector.broadcast %5 : vector<1x64xf32> to vector<8x64xf32>
    %11 = arith.addf %9, %10 : vector<8x64xf32>
    %12 = math.tanh %11 : vector<8x64xf32>
    %cst_12 = arith.constant dense<0.000000e+00> : vector<8x128xf32>
    %13 = tpu.matmul %12, %6, %cst_12 {dimension_numbers = #tpu.dot_dimension_numbers<[1], [0], [0], [1], [0, 0, 1, 1], [], []>} : vector<8x64xf32>, vector<64x128xf32>, vector<8x128xf32> -> vector<8x128xf32>
    %14 = vector.broadcast %7 : vector<1x128xf32> to vector<8x128xf32>
    %15 = arith.addf %13, %14 : vector<8x128xf32>
    %16 = arith.subf %15, %3 : vector<8x128xf32>
    %17 = arith.mulf %16, %16 : vector<8x128xf32>
    %18 = arith.mulf %12, %12 : vector<8x64xf32>
    %cst_13 = arith.constant 1.000000e+00 : f32
    %19 = vector.broadcast %cst_13 : f32 to vector<8x64xf32>
    %20 = arith.subf %19, %18 : vector<8x64xf32>
    %21 = arith.mulf %20, %20 : vector<8x64xf32>
    %22 = vector.broadcast %8 : vector<1x64xf32> to vector<8x64xf32>
    %23 = arith.mulf %21, %22 : vector<8x64xf32>
    %c0_i32_14 = arith.constant 0 : i32
    %24 = arith.cmpi slt, %arg0, %c0_i32_14 : i32
    %25 = arith.extui %24 : i1 to i32
    %c0_i32_15 = arith.constant 0 : i32
    %26 = arith.cmpi ne, %25, %c0_i32_15 : i32
    scf.if %26 {
      %c0_20 = arith.constant 0 : index
      %c0_21 = arith.constant 0 : index
      %33 = vector.load %arg8[%c0_20, %c0_21] : memref<8x128xf32, #tpu.memory_space<vmem>>, vector<8x128xf32>
      %34 = vector.shape_cast %17 : vector<8x128xf32> to vector<1x8x128xf32>
      %cst_22 = arith.constant dense<0.000000e+00> : vector<8x128xf32>
      %35 = vector.multi_reduction <add>, %34, %cst_22 [0] : vector<1x8x128xf32> to vector<8x128xf32>
      %36 = arith.addf %33, %35 : vector<8x128xf32>
      %c0_23 = arith.constant 0 : index
      %c0_24 = arith.constant 0 : index
      %37 = vector.load %arg8[%c0_23, %c0_24] : memref<8x128xf32, #tpu.memory_space<vmem>>, vector<8x128xf32>
      tpu.vector_store %arg8[%c0_23, %c0_24], %36 {strides = array<i32>} : memref<8x128xf32, #tpu.memory_space<vmem>>, vector<8x128xf32>,
      %c0_25 = arith.constant 0 : index
      %c0_26 = arith.constant 0 : index
      %38 = vector.load %arg9[%c0_25, %c0_26] : memref<8x64xf32, #tpu.memory_space<vmem>>, vector<8x64xf32>
      %39 = vector.shape_cast %23 : vector<8x64xf32> to vector<1x8x64xf32>
      %cst_27 = arith.constant dense<0.000000e+00> : vector<8x64xf32>
      %40 = vector.multi_reduction <add>, %39, %cst_27 [0] : vector<1x8x64xf32> to vector<8x64xf32>
      %41 = arith.addf %38, %40 : vector<8x64xf32>
      %c0_28 = arith.constant 0 : index
      %c0_29 = arith.constant 0 : index
      %42 = vector.load %arg9[%c0_28, %c0_29] : memref<8x64xf32, #tpu.memory_space<vmem>>, vector<8x64xf32>
      tpu.vector_store %arg9[%c0_28, %c0_29], %41 {strides = array<i32>} : memref<8x64xf32, #tpu.memory_space<vmem>>, vector<8x64xf32>,
    } else {
    }
    %c0_i32_16 = arith.constant 0 : i32
    %27 = arith.cmpi eq, %arg0, %c0_i32_16 : i32
    %28 = arith.extui %27 : i1 to i32
    %c0_i32_17 = arith.constant 0 : i32
    %29 = arith.cmpi ne, %28, %c0_i32_17 : i32
    scf.if %29 {
      %33 = tpu.iota {dimensions = array<i32: 0>} : vector<8x128xi32>
      %c8_i32 = arith.constant 8 : i32
      %34 = arith.muli %arg0, %c8_i32 : i32
      %35 = vector.broadcast %34 : i32 to vector<8x128xi32>
      %36 = arith.addi %35, %33 : vector<8x128xi32>
      %c8_i32_20 = arith.constant 8 : i32
      %37 = vector.broadcast %c8_i32_20 : i32 to vector<8x128xi32>
      %38 = arith.muli %36, %37 : vector<8x128xi32>
      %39 = tpu.iota {dimensions = array<i32: 1>} : vector<8x128xi32>
      %c4_i32 = arith.constant 4 : i32
      %40 = vector.broadcast %c4_i32 : i32 to vector<8x128xi32>
      %41 = arith.shrsi %39, %40 : vector<8x128xi32>
      %42 = arith.addi %38, %41 : vector<8x128xi32>
      %c8_i32_21 = arith.constant 8 : i32
      %43 = vector.broadcast %c8_i32_21 : i32 to vector<8x128xi32>
      %44 = arith.cmpi slt, %42, %43 : vector<8x128xi32>
      %cst_22 = arith.constant 0.000000e+00 : f32
      %45 = vector.broadcast %cst_22 : f32 to vector<8x128xf32>
      %46 = arith.select %44, %17, %45 : vector<8x128xi1>, vector<8x128xf32>
      %47 = tpu.iota {dimensions = array<i32: 0>} : vector<8x64xi32>
      %c8_i32_23 = arith.constant 8 : i32
      %48 = arith.muli %arg0, %c8_i32_23 : i32
      %49 = vector.broadcast %48 : i32 to vector<8x64xi32>
      %50 = arith.addi %49, %47 : vector<8x64xi32>
      %c8_i32_24 = arith.constant 8 : i32
      %51 = vector.broadcast %c8_i32_24 : i32 to vector<8x64xi32>
      %52 = arith.muli %50, %51 : vector<8x64xi32>
      %53 = tpu.iota {dimensions = array<i32: 1>} : vector<8x64xi32>
      %c3_i32 = arith.constant 3 : i32
      %54 = vector.broadcast %c3_i32 : i32 to vector<8x64xi32>
      %55 = arith.shrsi %53, %54 : vector<8x64xi32>
      %56 = arith.addi %52, %55 : vector<8x64xi32>
      %c8_i32_25 = arith.constant 8 : i32
      %57 = vector.broadcast %c8_i32_25 : i32 to vector<8x64xi32>
      %58 = arith.cmpi slt, %56, %57 : vector<8x64xi32>
      %cst_26 = arith.constant 0.000000e+00 : f32
      %59 = vector.broadcast %cst_26 : f32 to vector<8x64xf32>
      %60 = arith.select %58, %23, %59 : vector<8x64xi1>, vector<8x64xf32>
      %c0_27 = arith.constant 0 : index
      %c0_28 = arith.constant 0 : index
      %61 = vector.load %arg8[%c0_27, %c0_28] : memref<8x128xf32, #tpu.memory_space<vmem>>, vector<8x128xf32>
      %62 = vector.shape_cast %46 : vector<8x128xf32> to vector<1x8x128xf32>
      %cst_29 = arith.constant dense<0.000000e+00> : vector<8x128xf32>
      %63 = vector.multi_reduction <add>, %62, %cst_29 [0] : vector<1x8x128xf32> to vector<8x128xf32>
      %64 = arith.addf %61, %63 : vector<8x128xf32>
      %c0_30 = arith.constant 0 : index
      %c0_31 = arith.constant 0 : index
      %65 = vector.load %arg8[%c0_30, %c0_31] : memref<8x128xf32, #tpu.memory_space<vmem>>, vector<8x128xf32>
      tpu.vector_store %arg8[%c0_30, %c0_31], %64 {strides = array<i32>} : memref<8x128xf32, #tpu.memory_space<vmem>>, vector<8x128xf32>,
      %c0_32 = arith.constant 0 : index
      %c0_33 = arith.constant 0 : index
      %66 = vector.load %arg9[%c0_32, %c0_33] : memref<8x64xf32, #tpu.memory_space<vmem>>, vector<8x64xf32>
      %67 = vector.shape_cast %60 : vector<8x64xf32> to vector<1x8x64xf32>
      %cst_34 = arith.constant dense<0.000000e+00> : vector<8x64xf32>
      %68 = vector.multi_reduction <add>, %67, %cst_34 [0] : vector<1x8x64xf32> to vector<8x64xf32>
      %69 = arith.addf %66, %68 : vector<8x64xf32>
      %c0_35 = arith.constant 0 : index
      %c0_36 = arith.constant 0 : index
      %70 = vector.load %arg9[%c0_35, %c0_36] : memref<8x64xf32, #tpu.memory_space<vmem>>, vector<8x64xf32>
      tpu.vector_store %arg9[%c0_35, %c0_36], %69 {strides = array<i32>} : memref<8x64xf32, #tpu.memory_space<vmem>>, vector<8x64xf32>,
    } else {
    }
    %c0_i32_18 = arith.constant 0 : i32
    %30 = arith.cmpi eq, %arg0, %c0_i32_18 : i32
    %31 = arith.extui %30 : i1 to i32
    %c0_i32_19 = arith.constant 0 : i32
    %32 = arith.cmpi ne, %31, %c0_i32_19 : i32
    scf.if %32 {
      %c0_20 = arith.constant 0 : index
      %c0_21 = arith.constant 0 : index
      %33 = vector.load %arg8[%c0_20, %c0_21] : memref<8x128xf32, #tpu.memory_space<vmem>>, vector<8x128xf32>
      %34 = vector.shape_cast %33 : vector<8x128xf32> to vector<1x8x128xf32>
      %cst_22 = arith.constant dense<0.000000e+00> : vector<1xf32>
      %35 = vector.multi_reduction <add>, %34, %cst_22 [1, 2] : vector<1x8x128xf32> to vector<1xf32>
      %36 = vector.shape_cast %35 : vector<1xf32> to vector<1x1x1xf32>
      %37 = vector.extract %36[0, 0, 0] : f32 from vector<1x1x1xf32>
      %cst_23 = arith.constant 7.812500e-03 : f32
      %38 = arith.mulf %37, %cst_23 : f32
      %c0_24 = arith.constant 0 : index
      %c0_25 = arith.constant 0 : index
      %39 = vector.load %arg9[%c0_24, %c0_25] : memref<8x64xf32, #tpu.memory_space<vmem>>, vector<8x64xf32>
      %40 = vector.shape_cast %39 : vector<8x64xf32> to vector<1x8x64xf32>
      %cst_26 = arith.constant dense<0.000000e+00> : vector<1xf32>
      %41 = vector.multi_reduction <add>, %40, %cst_26 [1, 2] : vector<1x8x64xf32> to vector<1xf32>
      %42 = vector.shape_cast %41 : vector<1xf32> to vector<1x1x1xf32>
      %43 = vector.extract %42[0, 0, 0] : f32 from vector<1x1x1xf32>
      %cst_27 = arith.constant 1.250000e-01 : f32
      %44 = arith.mulf %43, %cst_27 : f32
      %45 = arith.addf %38, %44 : f32
      %c0_28 = arith.constant 0 : index
      %c0_29 = arith.constant 0 : index
      %46 = memref.load %arg7[%c0_28, %c0_29] : memref<1x1xf32, #tpu.memory_space<smem>>
      memref.store %45, %arg7[%c0_28, %c0_29] : memref<1x1xf32, #tpu.memory_space<smem>>
    } else {
    }
    return
  }
  func.func @transform_0(%arg0: i32) -> (i32, i32) {
    %c0_i32 = arith.constant 0 : i32
    %c0_i32_0 = arith.constant 0 : i32
    return %arg0, %c0_i32 : i32, i32
  }
  func.func @transform_1(%arg0: i32) -> (i32, i32) {
    %c0_i32 = arith.constant 0 : i32
    %c0_i32_0 = arith.constant 0 : i32
    %c0_i32_1 = arith.constant 0 : i32
    return %c0_i32, %c0_i32_0 : i32, i32
  }
  func.func @transform_2(%arg0: i32) -> (i32, i32) {
    %c0_i32 = arith.constant 0 : i32
    %c0_i32_0 = arith.constant 0 : i32
    %c0_i32_1 = arith.constant 0 : i32
    return %c0_i32, %c0_i32_0 : i32, i32
  }
  func.func @transform_3(%arg0: i32) -> (i32, i32) {
    %c0_i32 = arith.constant 0 : i32
    %c0_i32_0 = arith.constant 0 : i32
    %c0_i32_1 = arith.constant 0 : i32
    return %c0_i32, %c0_i32_0 : i32, i32
  }
  func.func @transform_4(%arg0: i32) -> (i32, i32) {
    %c0_i32 = arith.constant 0 : i32
    %c0_i32_0 = arith.constant 0 : i32
    %c0_i32_1 = arith.constant 0 : i32
    return %c0_i32, %c0_i32_0 : i32, i32
  }
  func.func @transform_5(%arg0: i32) -> (i32, i32) {
    %c0_i32 = arith.constant 0 : i32
    %c0_i32_0 = arith.constant 0 : i32
    %c0_i32_1 = arith.constant 0 : i32
    return %c0_i32, %c0_i32_0 : i32, i32
  }
  func.func @transform_6(%arg0: i32) -> (i32, i32) {
    %c0_i32 = arith.constant 0 : i32
    %c0_i32_0 = arith.constant 0 : i32
    %c0_i32_1 = arith.constant 0 : i32
    return %c0_i32, %c0_i32_0 : i32, i32
  }
}

</mosaic_0001>

<llo_original>
// kernel: tpu_custom_call.1
$region0: #{tpu_custom_call.1}
  #allocation0 [shape = 'u32[]', space=smem, size = 0x4, offset = 0x4, fixed_abs, tag = 'smem constant byte address 0x4 - core index']
  #allocation1 [shape = 'u32[72,128]{1,0:T(1,128)}', space=vmem, size = 0x9000, scoped, tag = 'internal scratch']
  #allocation2 [shape = 'f32[8,128]{1,0:T(8,128)}', space=vmem, size = 0x1000, scoped, tag = 'scratch operand']
  #allocation3 [shape = 'f32[8,64]{1,0:T(8,128)}', space=vmem, size = 0x1000, scoped, tag = 'scratch operand']
  %s0 = inlined_call_operand.vmem [shape: f32[8,128], index: 0, kind: input, shape index: {}]
  %s1 = inlined_call_operand.vmem [shape: f32[128,64], index: 1, kind: input, shape index: {}]
  %s2 = inlined_call_operand.vmem [shape: f32[1,64], index: 2, kind: input, shape index: {}]
  %s3 = inlined_call_operand.vmem [shape: f32[64,128], index: 3, kind: input, shape index: {}]
  %s4 = inlined_call_operand.vmem [shape: f32[1,128], index: 4, kind: input, shape index: {}]
  %s5 = inlined_call_operand.vmem [shape: f32[1,64], index: 5, kind: input, shape index: {}]
  %s6 = inlined_call_operand.hbm [shape: f32[1,1], index: 6, kind: output, shape index: {}]
  %s7 = sld [smem:[#allocation0]]
  $region46: #{tpu_custom_call.1} parent=0
    _
  %s9 = ssub.s32 1, %s7
  %s10 = scalar_select 0, %s9, %s7
  $region1: #{tpu_custom_call.1} parent=0
    #allocation4 [shape = 'u8[512]{0}', space=smem, size = 0x200, scoped, tag = 'output window, operand 0, single buffered']
    #allocation5 [shape = 's32[1]{0}', space=sflag, size = 0x4, scoped, tag = 'scoped memory for tpu_custom_call.1']
    %11 = vsyncpa [#allocation5], 0
    // Predicated region
    $region2: #{tpu_custom_call.1} parent=1 // pred_check
      _
    $region3: #{tpu_custom_call.1} parent=1 // pred_check_branch
      %13 = sbr.rel (0) target = $region5
    $region4: #{tpu_custom_call.1} parent=1 // pred_region
      _
    $region5: #{tpu_custom_call.1} parent=1 // pred_fallthru
      _
    // Predicated region
    $region6: #{tpu_custom_call.1} parent=1 // pred_check
      _
    $region7: #{tpu_custom_call.1} parent=1 // pred_check_branch
      %15 = sbr.rel (0) target = $region9
    $region8: #{tpu_custom_call.1} parent=1 // pred_region
      _
    $region9: #{tpu_custom_call.1} parent=1 // pred_fallthru
      _
    // Predicated region
    $region10: #{tpu_custom_call.1} parent=1 // pred_check
      _
    $region11: #{tpu_custom_call.1} parent=1 // pred_check_branch
      %17 = sbr.rel (0) target = $region13
    $region12: #{tpu_custom_call.1} parent=1 // pred_region
      _
    $region13: #{tpu_custom_call.1} parent=1 // pred_fallthru
      _
    // Predicated region
    $region14: #{tpu_custom_call.1} parent=1 // pred_check
      _
    $region15: #{tpu_custom_call.1} parent=1 // pred_check_branch
      %19 = sbr.rel (0) target = $region17
    $region16: #{tpu_custom_call.1} parent=1 // pred_region
      _
    $region17: #{tpu_custom_call.1} parent=1 // pred_fallthru
      _
    // Predicated region
    $region18: #{tpu_custom_call.1} parent=1 // pred_check
      _
    $region19: #{tpu_custom_call.1} parent=1 // pred_check_branch
      %21 = sbr.rel (0) target = $region21
    $region20: #{tpu_custom_call.1} parent=1 // pred_region
      _
    $region21: #{tpu_custom_call.1} parent=1 // pred_fallthru
      _
    // Predicated region
    $region22: #{tpu_custom_call.1} parent=1 // pred_check
      _
    $region23: #{tpu_custom_call.1} parent=1 // pred_check_branch
      %23 = sbr.rel (0) target = $region25
    $region24: #{tpu_custom_call.1} parent=1 // pred_region
      _
    $region25: #{tpu_custom_call.1} parent=1 // pred_fallthru
      _
    %p24 = scmp.eq.s32.totalorder 0, 0
    // Predicated region
    $region26: #{tpu_custom_call.1} parent=1 // pred_check
      %p25 = pneg %p24
    $region27: #{tpu_custom_call.1} parent=1 // pred_check_branch
      %27 = sbr.rel (%p25) target = $region29
    $region28: #{tpu_custom_call.1} parent=1 // pred_region
      %28 = vst [vmem:[#allocation2] sm:$0xff] 0.0
      %vm29 = vcmask 523264
      %30 = vst.msk [vmem:[#allocation3] sm:$0xff] %vm29, 0.0
    $region29: #{tpu_custom_call.1} parent=1 // pred_fallthru
      _
    %v31 = vld [vmem:[%s0] sm:$0xff]
    %v32 = vld [vmem:[%s1] sm:$0xff]
    %v33 = vld [vmem:[%s1 + $0x8] sm:$0xff]
    %v34 = vld [vmem:[%s1 + $0x10] sm:$0xff]
    %v35 = vld [vmem:[%s1 + $0x18] sm:$0xff]
    %v36 = vld [vmem:[%s1 + $0x20] sm:$0xff]
    %v37 = vld [vmem:[%s1 + $0x28] sm:$0xff]
    %v38 = vld [vmem:[%s1 + $0x30] sm:$0xff]
    %v39 = vld [vmem:[%s1 + $0x38] sm:$0xff]
    %v40 = vld [vmem:[%s1 + $0x40] sm:$0xff]
    %v41 = vld [vmem:[%s1 + $0x48] sm:$0xff]
    %v42 = vld [vmem:[%s1 + $0x50] sm:$0xff]
    %v43 = vld [vmem:[%s1 + $0x58] sm:$0xff]
    %v44 = vld [vmem:[%s1 + $0x60] sm:$0xff]
    %v45 = vld [vmem:[%s1 + $0x68] sm:$0xff]
    %v46 = vld [vmem:[%s1 + $0x70] sm:$0xff]
    %v47 = vld [vmem:[%s1 + $0x78] sm:$0xff]
    %v48 = vld [vmem:[%s2] sm:$0x1]
    %v49 = vld [vmem:[%s3] sm:$0xff]
    %v50 = vld [vmem:[%s3 + $0x8] sm:$0xff]
    %v51 = vld [vmem:[%s3 + $0x10] sm:$0xff]
    %v52 = vld [vmem:[%s3 + $0x18] sm:$0xff]
    %v53 = vld [vmem:[%s3 + $0x20] sm:$0xff]
    %v54 = vld [vmem:[%s3 + $0x28] sm:$0xff]
    %v55 = vld [vmem:[%s3 + $0x30] sm:$0xff]
    %v56 = vld [vmem:[%s3 + $0x38] sm:$0xff]
    %v57 = vld [vmem:[%s4] sm:$0x1]
    %v58 = vld [vmem:[%s5] sm:$0x1]
    %v60 = vperm.slane %v48, 0
    %62 = vmatpush.msra.mxu0 %v47
    %63 = vmatpush.msra.mxu0 %v46
    %64 = vmatpush.msra.mxu0 %v45
    %65 = vmatpush.msra.mxu0 %v44
    %66 = vmatpush.msra.mxu0 %v43
    %67 = vmatpush.msra.mxu0 %v42
    %68 = vmatpush.msra.mxu0 %v41
    %69 = vmatpush.msra.mxu0 %v40
    %70 = vmatpush.msra.mxu0 %v39
    %71 = vmatpush.msra.mxu0 %v38
    %72 = vmatpush.msra.mxu0 %v37
    %73 = vmatpush.msra.mxu0 %v36
    %74 = vmatpush.msra.mxu0 %v35
    %75 = vmatpush.msra.mxu0 %v34
    %76 = vmatpush.msra.mxu0 %v33
    %77 = vmatpush.msra.mxu0 %v32
    %78 = vmatmul.f32.gmra.mxu0 %v31
    %v79 = vpop.f32.mrf.mxu0
    %v80 = vadd.f32 %v60, %v79
    %81 = vdwg.mxu0
    %v82 = vtanh.pop %v80
    %v84 = vperm.slane %v57, 0
    %vm86 = vcmask 523264
    %v88 = vsel %vm86, %v82, 0
    %90 = vmatpush.msra.mxu0 0.0
    %91 = vmatpush.msra.mxu0 0.0
    %92 = vmatpush.msra.mxu0 0.0
    %93 = vmatpush.msra.mxu0 0.0
    %94 = vmatpush.msra.mxu0 0.0
    %95 = vmatpush.msra.mxu0 0.0
    %96 = vmatpush.msra.mxu0 0.0
    %97 = vmatpush.msra.mxu0 0.0
    %98 = vmatpush.msra.mxu0 %v56
    %99 = vmatpush.msra.mxu0 %v55
    %100 = vmatpush.msra.mxu0 %v54
    %101 = vmatpush.msra.mxu0 %v53
    %102 = vmatpush.msra.mxu0 %v52
    %103 = vmatpush.msra.mxu0 %v51
    %104 = vmatpush.msra.mxu0 %v50
    %105 = vmatpush.msra.mxu0 %v49
    %106 = vmatmul.f32.gmra.mxu0 %v88
    %v107 = vpop.f32.mrf.mxu0
    %v108 = vadd.f32 %v84, %v107
    %109 = vdwg.mxu0
    %v110 = vsub.f32 %v108, %v31
    %v111 = vmul.f32 %v110, %v110
    %v112 = vmul.f32 %v82, %v82
    %v113 = vsub.f32 1.0, %v112
    %v114 = vmul.f32 %v113, %v113
    %v116 = vperm.slane %v58, 0
    %v118 = vmul.f32 %v114, %v116
    %p119 = scmp.lt.s32.totalorder 0, 0
    // Predicated region
    $region30: #{tpu_custom_call.1} parent=1 // pred_check
      %p120 = pneg %p119
    $region31: #{tpu_custom_call.1} parent=1 // pred_check_branch
      %122 = sbr.rel (%p120) target = $region33
    $region32: #{tpu_custom_call.1} parent=1 // pred_region
      %v123 = vld [vmem:[#allocation2] sm:$0xff]
      %v124 = vadd.f32 %v111, 0.0
      %v125 = vadd.f32 %v123, %v124
      %126 = vst [vmem:[#allocation2] sm:$0xff] %v125
      %v127 = vld [vmem:[#allocation3] sm:$0xff]
      %v128 = vadd.f32 %v118, 0.0
      %v129 = vadd.f32 %v127, %v128
      %130 = vst.msk [vmem:[#allocation3] sm:$0xff] %vm86, %v129
    $region33: #{tpu_custom_call.1} parent=1 // pred_fallthru
      _
    // Predicated region
    $region34: #{tpu_custom_call.1} parent=1 // pred_check
      %p131 = pneg %p24
    $region35: #{tpu_custom_call.1} parent=1 // pred_check_branch
      %133 = sbr.rel (%p131) target = $region37
    $region36: #{tpu_custom_call.1} parent=1 // pred_region
      %v134 = vlaneseq
      %v135 = vshrl.u32 %v134, 7
      %s136 = smul.u32 0, 8
      %v137 = vstv %s136
      %v138 = vadd.s32 %v137, %v135
      %v139 = vmul.u32 %v138, 8
      %v140 = vlaneseq
      %v141 = vand.u32 %v140, 127
      %v142 = vshra.s32 %v141, 4
      %v143 = vadd.s32 %v139, %v142
      %vm144 = vcmp.lt.s32.totalorder %v143, 8
      %v145 = vsel %vm144, %v111, 0.0
      %v146 = vshra.s32 %v141, 3
      %v147 = vadd.s32 %v139, %v146
      %vm148 = vcmp.lt.s32.totalorder %v147, 8
      %v149 = vsel %vm148, %v118, 0.0
      %v150 = vld [vmem:[#allocation2] sm:$0xff]
      %v151 = vadd.f32 %v145, 0.0
      %v152 = vadd.f32 %v150, %v151
      %153 = vst [vmem:[#allocation2] sm:$0xff] %v152
      %v154 = vld [vmem:[#allocation3] sm:$0xff]
      %v155 = vadd.f32 %v149, 0.0
      %v156 = vadd.f32 %v154, %v155
      %157 = vst.msk [vmem:[#allocation3] sm:$0xff] %vm86, %v156
      %v158 = vld [vmem:[#allocation2] sm:$0xff]
      %159 = vadd.xlane.f32.xlu0 %v158
      %v160 = vpop.xlane.xlu0 %159
      %v161 = vrot.slane %v160, 4
      %v162 = vadd.f32 %v160, %v161
      %v163 = vrot.slane %v162, 2
      %v164 = vadd.f32 %v162, %v163
      %v165 = vrot.slane %v164, 1
      %v166 = vadd.f32 %v164, %v165
      %s167 = vtos %v166
      %s168 = smul.f32 %s167, 0.0078125
      %v169 = vld [vmem:[#allocation3] sm:$0xff]
      %v170 = vsel %vm86, %v169, 0.0
      %171 = vadd.xlane.f32.xlu0 %v170
      %v172 = vpop.xlane.xlu0 %171
      %v173 = vrot.slane %v172, 4
      %v174 = vadd.f32 %v172, %v173
      %v175 = vrot.slane %v174, 2
      %v176 = vadd.f32 %v174, %v175
      %v177 = vrot.slane %v176, 1
      %v178 = vadd.f32 %v176, %v177
      %s179 = vtos %v178
      %s180 = smul.f32 %s179, 0.125
      %s181 = sadd.f32 %s168, %s180
      %s182 = scalar_lea.smem [#allocation4], 0
      %183 = sst [smem:[%s182]] %s181
    $region37: #{tpu_custom_call.1} parent=1 // pred_fallthru
      _
    // Predicated region
    $region38: #{tpu_custom_call.1} parent=1 // pred_check
      _
    $region39: #{tpu_custom_call.1} parent=1 // pred_check_branch
      %185 = sbr.rel (0) target = $region41
    $region40: #{tpu_custom_call.1} parent=1 // pred_region
      %187 = vsyncadd [#allocation5], 0
      %s189 = sshll.u32 %s6, 4
      %s190 = int_to_ptr.hbm [resolvable:$true] %s189
      %192 = dma.smem_to_hbm [#allocation4], 16, %s190, [#allocation5]
    $region41: #{tpu_custom_call.1} parent=1 // pred_fallthru
      _
    // Predicated region
    $region42: #{tpu_custom_call.1} parent=1 // pred_check
      _
    $region43: #{tpu_custom_call.1} parent=1 // pred_check_branch
      %194 = sbr.rel (0) target = $region45
    $region44: #{tpu_custom_call.1} parent=1 // pred_region
      %196 = dma.done [#allocation5], 16
    $region45: #{tpu_custom_call.1} parent=1 // pred_fallthru
      _
    %197 = sfence
    %198 = vsyncpa [#allocation5], 1

</llo_original>
